<compile_context>
chip_gen: v7x
topology: tpu7x:2x2x1
jax: 0.10.0
libtpu: 0.0.40
codegen_flags: <defaults>
</compile_context>

<pallas_src>
import functools

import jax
import jax.numpy as jnp
from jax.experimental import pallas as pl
from jax.experimental.pallas import tpu as pltpu

LN_EPS = 1e-5       # Python float -> never becomes a captured traced constant
NEG_BIG = -1e30     # Python float mask value for padded softmax columns


def _round_up(a: int, b: int) -> int:
    return (a + b - 1) // b * b


def _output_head_kernel(x_ref, gamma_ref, beta_ref, w_ref, b_ref, o_ref,
                        *, d_valid: int, d_padded: int):
    # x_ref: (tm, Dp) row tile; gamma/beta/bias: (1, Dp) f32;
    # w_ref: (Dp, Dp) bf16, already transposed to (in, out) on the host.
    x = x_ref[...].astype(jnp.float32)
    needs_mask = d_valid != d_padded
    inv_d = 1.0 / float(d_valid)                      # static Python float

    # --- LayerNorm over the valid feature lanes (padded lanes hold zeros) ---
    mean = jnp.sum(x, axis=-1, keepdims=True) * inv_d
    centered = x - mean
    if needs_mask:
        lane = jax.lax.broadcasted_iota(jnp.int32, x.shape, 1)
        feat_mask = lane < d_valid
        centered = jnp.where(feat_mask, centered, 0.0)
    var = jnp.sum(centered * centered, axis=-1, keepdims=True) * inv_d
    xn = centered * jax.lax.rsqrt(var + LN_EPS)
    xn = xn * gamma_ref[...] + beta_ref[...]

    # --- Linear: y = xn @ W.T + b.  W was transposed on the host, so this is
    #     the canonical [M,K]x[K,N] MXU contraction: bf16 operands, f32 acc. ---
    y = jax.lax.dot_general(
        xn.astype(jnp.bfloat16), w_ref[...],
        dimension_numbers=(((1,), (0,)), ((), ())),
        preferred_element_type=jnp.float32)
    y = y + b_ref[...]

    # --- Softmax over the last dim (dim_range = -1); padded cols masked out ---
    if needs_mask:
        y = jnp.where(feat_mask, y, NEG_BIG)
    m = jnp.max(y, axis=-1, keepdims=True)
    e = jnp.exp(y - m)
    denom = jnp.sum(e, axis=-1, keepdims=True)
    # Exact (tm,1) reciprocal -> rows sum to 1 exactly.  On hardware
    # pl.reciprocal(denom, approx=True) moves this to the EUP slot if the
    # ~1e-4 normalization error is acceptable.
    o_ref[...] = (e * (1.0 / denom)).astype(o_ref.dtype)


def _default_vmem_limit_bytes() -> int:
    """~75% of this generation's per-core VMEM (96 MiB v5e/v6e, 48 MiB v7x)."""
    cap = 128 * 1024 * 1024
    try:
        cap = int(getattr(pltpu.get_tpu_info(), "vmem_capacity_bytes", cap))
    except Exception:   # CPU / interpret mode: keep the conservative default
        pass
    return int(0.75 * cap)


def _pick_row_tile(n_rows: int, d_padded: int, requested_tm: int,
                   vmem_budget_bytes: int, x_itemsize: int,
                   out_itemsize: int) -> int:
    """Largest row tile (multiple of 8) whose full VMEM footprint fits."""
    w_bytes = d_padded * d_padded * 2      # bf16 W, single-buffered (Buffered(1))
    vec_bytes = 3 * d_padded * 4           # gamma / beta / bias f32, single-buffered
    fixed_bytes = w_bytes + vec_bytes
    if fixed_bytes > vmem_budget_bytes:
        # TODO(synk): streamed-W (column-tiled, online-softmax) path goes here.
        raise ValueError(
            f"resident bf16 weight needs {fixed_bytes / 2**20:.1f} MiB but the "
            f"VMEM budget is {vmem_budget_bytes / 2**20:.1f} MiB; streamed-W "
            "path not implemented for this D")
    tm = min(_round_up(requested_tm, 8), _round_up(n_rows, 8))
    while tm > 8:
        # double-buffered x / out tiles at their real itemsizes ...
        io_bytes = 2 * tm * d_padded * (x_itemsize + out_itemsize)
        # ... plus in-kernel live temporaries (x f32 copy, centered/xn, xn bf16, y/e)
        temp_bytes = int(3.5 * tm * d_padded * 4)
        if fixed_bytes + io_bytes + temp_bytes <= vmem_budget_bytes:
            break
        tm -= 8
    return max(tm, 8)


def output_head(x, gamma, beta, weight, bias, *, tm=256, out_dtype=None,
                vmem_limit_bytes=None):
    """x: [B, S, D]; weight: [D, D] PyTorch Linear weight in (out, in) layout."""
    B, S, D = x.shape
    N = B * S
    out_dtype = x.dtype if out_dtype is None else out_dtype
    if vmem_limit_bytes is None:
        vmem_limit_bytes = _default_vmem_limit_bytes()

    # Feature padding: none when D is already lane-aligned (avoids a full HBM
    # copy of x / out); otherwise pad to 256 (full 2x256x256 MXU passes on
    # v6e / v7x) unless D is tiny enough for a single 128-lane tile.
    if D % 128 == 0:
        Dp = D
    elif D <= 128:
        Dp = 128
    else:
        Dp = _round_up(D, 256)
    pad_d = Dp - D

    tm = _pick_row_tile(N, Dp, tm, int(vmem_limit_bytes),
                        jnp.dtype(x.dtype).itemsize,
                        jnp.dtype(out_dtype).itemsize)
    grid_rows = pl.cdiv(N, tm)   # rows are never padded; trailing block is partial

    x2 = x.reshape(N, D)
    if pad_d:
        x2 = jnp.pad(x2, ((0, 0), (0, pad_d)))

    # One-time host transpose (before the bf16 cast) -> canonical MXU feed.
    w_t = weight.T
    if pad_d:
        w_t = jnp.pad(w_t, ((0, pad_d), (0, pad_d)))
    w_bf16 = w_t.astype(jnp.bfloat16)        # halves W's DMA + VMEM footprint

    def _vec(v):
        v = v.astype(jnp.float32)
        if pad_d:
            v = jnp.pad(v, (0, pad_d))
        return v.reshape(1, Dp)

    gamma_p, beta_p, bias_p = _vec(gamma), _vec(beta), _vec(bias)

    invariant = lambda i: (0, 0)
    kernel = functools.partial(_output_head_kernel, d_valid=D, d_padded=Dp)

    out2 = pl.pallas_call(
        kernel,
        out_shape=jax.ShapeDtypeStruct((N, Dp), out_dtype),
        grid_spec=pltpu.PrefetchScalarGridSpec(
            num_scalar_prefetch=0,
            grid=(grid_rows,),
            in_specs=[
                pl.BlockSpec((tm, Dp), lambda i: (i, 0)),            # x row tile
                pl.BlockSpec((1, Dp), invariant,
                             pipeline_mode=pl.Buffered(1)),          # LN gamma
                pl.BlockSpec((1, Dp), invariant,
                             pipeline_mode=pl.Buffered(1)),          # LN beta
                pl.BlockSpec((Dp, Dp), invariant,
                             pipeline_mode=pl.Buffered(1)),          # W.T (resident, bf16)
                pl.BlockSpec((1, Dp), invariant,
                             pipeline_mode=pl.Buffered(1)),          # Linear bias
            ],
            out_specs=pl.BlockSpec((tm, Dp), lambda i: (i, 0)),
        ),
        compiler_params=pltpu.CompilerParams(
            dimension_semantics=("parallel",),
            vmem_limit_bytes=int(vmem_limit_bytes)),
    )(x2, gamma_p, beta_p, w_bf16, bias_p)

    if pad_d:
        out2 = out2[:, :D]
    return out2.reshape(B, S, D)


def output_head_ref(x, gamma, beta, weight, bias):
    mean = jnp.mean(x, axis=-1, keepdims=True)
    var = jnp.mean((x - mean) ** 2, axis=-1, keepdims=True)
    xn = (x - mean) / jnp.sqrt(var + LN_EPS) * gamma + beta
    y = xn @ weight.T + bias
    return jax.nn.softmax(y, axis=-1)


if __name__ == "__main__":
    B, S, D = 2, 8, 32          # batch=2, seq=8, hidden(dim)=32
    key = jax.random.PRNGKey(0)
    kx, kw, kb = jax.random.split(key, 3)

    x = jax.random.normal(kx, (B, S, D), dtype=jnp.float32)

    # Deterministic parameter init (mirrors the module's parameter shapes):
    gamma = jnp.ones((D,), dtype=jnp.float32)                 # LayerNorm weight
    beta = jnp.zeros((D,), dtype=jnp.float32)                 # LayerNorm bias
    bound = 1.0 / (D ** 0.5)
    weight = jax.random.uniform(kw, (D, D), jnp.float32, -bound, bound)  # Linear (out, in)
    bias = jax.random.uniform(kb, (D,), jnp.float32, -bound, bound)      # Linear bias

    out = jax.block_until_ready(output_head(x, gamma, beta, weight, bias))
    ref = output_head_ref(x, gamma, beta, weight, bias)

    assert out.shape == (B, S, D)
    # Softmax rows must sum to 1 (exercises the padded-column masking).
    assert jnp.allclose(jnp.sum(out, axis=-1), 1.0, atol=1e-3)
    # Looser tolerance vs the f32 reference because the matmul runs in bf16
    # (with f32 accumulation) on the MXU.
    assert jnp.allclose(out, ref, atol=1e-2, rtol=5e-2), "mismatch vs reference"

    print("KERNEL_OK")
</pallas_src>

<mosaic_0001>
module attributes {stable_mosaic.version = 11 : i64} {
  func.func @_output_head_kernel(%arg0: i32, %arg1: memref<16x128xf32, #tpu.memory_space<vmem>>, %arg2: memref<1x128xf32, #tpu.memory_space<vmem>>, %arg3: memref<1x128xf32, #tpu.memory_space<vmem>>, %arg4: memref<128x128xbf16, #tpu.memory_space<vmem>>, %arg5: memref<1x128xf32, #tpu.memory_space<vmem>>, %arg6: memref<16x128xf32, #tpu.memory_space<vmem>>) attributes {dimension_semantics = [#tpu.dimension_semantics<parallel>], iteration_bounds = array<i64: 1>, scalar_prefetch = 0 : i64, scratch_operands = 0 : i64, tpu.core_type = #tpu.core_type<tc>, window_params = [{transform_indices = @transform_0, window_bounds = array<i64: 16, 128>}, {pipeline_mode = #tpu.pipeline_mode<synchronous>, transform_indices = @transform_1, window_bounds = array<i64: 1, 128>}, {pipeline_mode = #tpu.pipeline_mode<synchronous>, transform_indices = @transform_2, window_bounds = array<i64: 1, 128>}, {pipeline_mode = #tpu.pipeline_mode<synchronous>, transform_indices = @transform_3, window_bounds = array<i64: 128, 128>}, {pipeline_mode = #tpu.pipeline_mode<synchronous>, transform_indices = @transform_4, window_bounds = array<i64: 1, 128>}, {transform_indices = @transform_5, window_bounds = array<i64: 16, 128>}]} {
    %c0 = arith.constant 0 : index
    %c0_0 = arith.constant 0 : index
    %0 = vector.load %arg1[%c0, %c0_0] : memref<16x128xf32, #tpu.memory_space<vmem>>, vector<16x128xf32>
    %cst = arith.constant dense<0.000000e+00> : vector<16xf32>
    %1 = vector.multi_reduction <add>, %0, %cst [1] : vector<16x128xf32> to vector<16xf32>
    %2 = vector.shape_cast %1 : vector<16xf32> to vector<16x1xf32>
    %cst_1 = arith.constant 3.125000e-02 : f32
    %3 = vector.broadcast %cst_1 : f32 to vector<16x1xf32>
    %4 = arith.mulf %2, %3 : vector<16x1xf32>
    %5 = vector.broadcast %4 : vector<16x1xf32> to vector<16x128xf32>
    %6 = arith.subf %0, %5 : vector<16x128xf32>
    %7 = tpu.iota {dimensions = array<i32: 1>} : vector<16x128xi32>
    %c32_i32 = arith.constant 32 : i32
    %8 = vector.broadcast %c32_i32 : i32 to vector<16x128xi32>
    %9 = arith.cmpi slt, %7, %8 : vector<16x128xi32>
    %cst_2 = arith.constant 0.000000e+00 : f32
    %10 = vector.broadcast %cst_2 : f32 to vector<16x128xf32>
    %11 = arith.select %9, %6, %10 : vector<16x128xi1>, vector<16x128xf32>
    %12 = arith.mulf %11, %11 : vector<16x128xf32>
    %cst_3 = arith.constant dense<0.000000e+00> : vector<16xf32>
    %13 = vector.multi_reduction <add>, %12, %cst_3 [1] : vector<16x128xf32> to vector<16xf32>
    %14 = vector.shape_cast %13 : vector<16xf32> to vector<16x1xf32>
    %cst_4 = arith.constant 3.125000e-02 : f32
    %15 = vector.broadcast %cst_4 : f32 to vector<16x1xf32>
    %16 = arith.mulf %14, %15 : vector<16x1xf32>
    %cst_5 = arith.constant 9.99999974E-6 : f32
    %17 = vector.broadcast %cst_5 : f32 to vector<16x1xf32>
    %18 = arith.addf %16, %17 : vector<16x1xf32>
    %19 = math.rsqrt %18 : vector<16x1xf32>
    %20 = vector.broadcast %19 : vector<16x1xf32> to vector<16x128xf32>
    %21 = arith.mulf %11, %20 : vector<16x128xf32>
    %c0_6 = arith.constant 0 : index
    %c0_7 = arith.constant 0 : index
    %22 = vector.load %arg2[%c0_6, %c0_7] : memref<1x128xf32, #tpu.memory_space<vmem>>, vector<1x128xf32>
    %23 = vector.broadcast %22 : vector<1x128xf32> to vector<16x128xf32>
    %24 = arith.mulf %21, %23 : vector<16x128xf32>
    %c0_8 = arith.constant 0 : index
    %c0_9 = arith.constant 0 : index
    %25 = vector.load %arg3[%c0_8, %c0_9] : memref<1x128xf32, #tpu.memory_space<vmem>>, vector<1x128xf32>
    %26 = vector.broadcast %25 : vector<1x128xf32> to vector<16x128xf32>
    %27 = arith.addf %24, %26 : vector<16x128xf32>
    %28 = arith.truncf %27 : vector<16x128xf32> to vector<16x128xbf16>
    %c0_10 = arith.constant 0 : index
    %c0_11 = arith.constant 0 : index
    %29 = vector.load %arg4[%c0_10, %c0_11] : memref<128x128xbf16, #tpu.memory_space<vmem>>, vector<128x128xbf16>
    %cst_12 = arith.constant dense<0.000000e+00> : vector<16x128xf32>
    %30 = tpu.matmul %28, %29, %cst_12 {dimension_numbers = #tpu.dot_dimension_numbers<[1], [0], [0], [1], [0, 0, 1, 1], [], []>} : vector<16x128xbf16>, vector<128x128xbf16>, vector<16x128xf32> -> vector<16x128xf32>
    %c0_13 = arith.constant 0 : index
    %c0_14 = arith.constant 0 : index
    %31 = vector.load %arg5[%c0_13, %c0_14] : memref<1x128xf32, #tpu.memory_space<vmem>>, vector<1x128xf32>
    %32 = vector.broadcast %31 : vector<1x128xf32> to vector<16x128xf32>
    %33 = arith.addf %30, %32 : vector<16x128xf32>
    %cst_15 = arith.constant -1.000000e+30 : f32
    %34 = vector.broadcast %cst_15 : f32 to vector<16x128xf32>
    %35 = arith.select %9, %33, %34 : vector<16x128xi1>, vector<16x128xf32>
    %cst_16 = arith.constant dense<0xFF800000> : vector<16xf32>
    %36 = vector.multi_reduction <maximumf>, %35, %cst_16 [1] : vector<16x128xf32> to vector<16xf32>
    %37 = vector.shape_cast %36 : vector<16xf32> to vector<16x1xf32>
    %38 = vector.broadcast %37 : vector<16x1xf32> to vector<16x128xf32>
    %39 = arith.subf %35, %38 : vector<16x128xf32>
    %40 = math.exp %39 : vector<16x128xf32>
    %cst_17 = arith.constant dense<0.000000e+00> : vector<16xf32>
    %41 = vector.multi_reduction <add>, %40, %cst_17 [1] : vector<16x128xf32> to vector<16xf32>
    %42 = vector.shape_cast %41 : vector<16xf32> to vector<16x1xf32>
    %cst_18 = arith.constant 1.000000e+00 : f32
    %43 = vector.broadcast %cst_18 : f32 to vector<16x1xf32>
    %44 = arith.divf %43, %42 : vector<16x1xf32>
    %45 = vector.broadcast %44 : vector<16x1xf32> to vector<16x128xf32>
    %46 = arith.mulf %40, %45 : vector<16x128xf32>
    %c0_19 = arith.constant 0 : index
    %c0_20 = arith.constant 0 : index
    %47 = vector.load %arg6[%c0_19, %c0_20] : memref<16x128xf32, #tpu.memory_space<vmem>>, vector<16x128xf32>
    tpu.vector_store %arg6[%c0_19, %c0_20], %46 {strides = array<i32>} : memref<16x128xf32, #tpu.memory_space<vmem>>, vector<16x128xf32>,
    return
  }
  func.func @transform_0(%arg0: i32) -> (i32, i32) {
    %c0_i32 = arith.constant 0 : i32
    %c0_i32_0 = arith.constant 0 : i32
    return %arg0, %c0_i32 : i32, i32
  }
  func.func @transform_1(%arg0: i32) -> (i32, i32) {
    %c0_i32 = arith.constant 0 : i32
    %c0_i32_0 = arith.constant 0 : i32
    %c0_i32_1 = arith.constant 0 : i32
    return %c0_i32, %c0_i32_0 : i32, i32
  }
  func.func @transform_2(%arg0: i32) -> (i32, i32) {
    %c0_i32 = arith.constant 0 : i32
    %c0_i32_0 = arith.constant 0 : i32
    %c0_i32_1 = arith.constant 0 : i32
    return %c0_i32, %c0_i32_0 : i32, i32
  }
  func.func @transform_3(%arg0: i32) -> (i32, i32) {
    %c0_i32 = arith.constant 0 : i32
    %c0_i32_0 = arith.constant 0 : i32
    %c0_i32_1 = arith.constant 0 : i32
    return %c0_i32, %c0_i32_0 : i32, i32
  }
  func.func @transform_4(%arg0: i32) -> (i32, i32) {
    %c0_i32 = arith.constant 0 : i32
    %c0_i32_0 = arith.constant 0 : i32
    %c0_i32_1 = arith.constant 0 : i32
    return %c0_i32, %c0_i32_0 : i32, i32
  }
  func.func @transform_5(%arg0: i32) -> (i32, i32) {
    %c0_i32 = arith.constant 0 : i32
    %c0_i32_0 = arith.constant 0 : i32
    return %arg0, %c0_i32 : i32, i32
  }
}

</mosaic_0001>

<llo_original>
// kernel: tpu_custom_call.1
$region0: #{tpu_custom_call.1}
  #allocation0 [shape = 'u32[]', space=smem, size = 0x4, offset = 0x4, fixed_abs, tag = 'smem constant byte address 0x4 - core index']
  #allocation1 [shape = 'u32[144,128]{1,0:T(1,128)}', space=vmem, size = 0x12000, scoped, tag = 'internal scratch']
  %s0 = inlined_call_operand.hbm [shape: f32[16,128], index: 0, kind: input, shape index: {}]
  %s1 = inlined_call_operand.hbm [shape: f32[1,128], index: 1, kind: input, shape index: {}]
  %s2 = inlined_call_operand.hbm [shape: f32[1,128], index: 2, kind: input, shape index: {}]
  %s3 = inlined_call_operand.hbm [shape: bf16[128,128], index: 3, kind: input, shape index: {}]
  %s4 = inlined_call_operand.hbm [shape: f32[1,128], index: 4, kind: input, shape index: {}]
  %s5 = inlined_call_operand.hbm [shape: f32[16,128], index: 5, kind: output, shape index: {}]
  %s6 = sld [smem:[#allocation0]]
  $region50: #{tpu_custom_call.1} parent=0
    _
  %s8 = ssub.s32 1, %s6
  %s9 = scalar_select 0, %s8, %s6
  $region1: #{tpu_custom_call.1} parent=0
    #allocation2 [shape = 'u8[8192]{0}', space=vmem, size = 0x2000, scoped, tag = 'input window, operand 0, single buffered']
    #allocation3 [shape = 's32[1]{0}', space=sflag, size = 0x4, scoped, tag = 'scoped memory for tpu_custom_call.1']
    #allocation4 [shape = 's32[1]{0}', space=sflag, size = 0x4, scoped, tag = 'scoped memory for tpu_custom_call.1']
    #allocation5 [shape = 'u8[512]{0}', space=vmem, size = 0x400, scoped, tag = 'input window, operand 1, single buffered']
    #allocation6 [shape = 's32[1]{0}', space=sflag, size = 0x4, scoped, tag = 'scoped memory for tpu_custom_call.1']
    #allocation7 [shape = 'u8[512]{0}', space=vmem, size = 0x400, scoped, tag = 'input window, operand 2, single buffered']
    #allocation8 [shape = 'u8[32768]{0}', space=vmem, size = 0x8000, scoped, tag = 'input window, operand 3, single buffered']
    #allocation9 [shape = 's32[1]{0}', space=sflag, size = 0x4, scoped, tag = 'scoped memory for tpu_custom_call.1']
    #allocation10 [shape = 'u8[512]{0}', space=vmem, size = 0x400, scoped, tag = 'input window, operand 4, single buffered']
    #allocation11 [shape = 'u8[8192]{0}', space=vmem, size = 0x2000, scoped, tag = 'output window, operand 0, single buffered']
    %10 = vsyncpa [#allocation3], 0
    %11 = vsyncpa [#allocation6], 0
    %12 = vsyncpa [#allocation9], 0
    %13 = vsyncpa [#allocation4], 0
    // Predicated region
    $region2: #{tpu_custom_call.1} parent=1 // pred_check
      _
    $region3: #{tpu_custom_call.1} parent=1 // pred_check_branch
      %15 = sbr.rel (0) target = $region5
    $region4: #{tpu_custom_call.1} parent=1 // pred_region
      %s17 = ssub.s32 256, 256
      %18 = vsyncadd [#allocation3], %s17
      %s19 = sshll.u32 [#allocation2], 4
      %s20 = int_to_ptr.vmem [resolvable:$true] %s19
      %25 = dma.hbm_to_vmem [thread:$0]  %s0, 256, %s20, [#allocation3], 128, 128, 8
    $region5: #{tpu_custom_call.1} parent=1 // pred_fallthru
      _
    // Predicated region
    $region6: #{tpu_custom_call.1} parent=1 // pred_check
      _
    $region7: #{tpu_custom_call.1} parent=1 // pred_check_branch
      %27 = sbr.rel (0) target = $region9
    $region8: #{tpu_custom_call.1} parent=1 // pred_region
      %s29 = ssub.s32 16, 16
      %30 = vsyncadd [#allocation6], %s29
      %s32 = sshll.u32 [#allocation5], 4
      %s33 = int_to_ptr.vmem [resolvable:$true] %s32
      %35 = dma.hbm_to_vmem [thread:$0]  %s1, 16, %s33, [#allocation6]
    $region9: #{tpu_custom_call.1} parent=1 // pred_fallthru
      _
    // Predicated region
    $region10: #{tpu_custom_call.1} parent=1 // pred_check
      _
    $region11: #{tpu_custom_call.1} parent=1 // pred_check_branch
      %37 = sbr.rel (0) target = $region13
    $region12: #{tpu_custom_call.1} parent=1 // pred_region
      %s39 = ssub.s32 16, 16
      %40 = vsyncadd [#allocation6], %s39
      %s42 = sshll.u32 [#allocation7], 4
      %s43 = int_to_ptr.vmem [resolvable:$true] %s42
      %45 = dma.hbm_to_vmem [thread:$0]  %s2, 16, %s43, [#allocation6]
    $region13: #{tpu_custom_call.1} parent=1 // pred_fallthru
      _
    // Predicated region
    $region14: #{tpu_custom_call.1} parent=1 // pred_check
      _
    $region15: #{tpu_custom_call.1} parent=1 // pred_check_branch
      %47 = sbr.rel (0) target = $region17
    $region16: #{tpu_custom_call.1} parent=1 // pred_region
      %s49 = ssub.s32 1024, 1024
      %50 = vsyncadd [#allocation9], %s49
      %s51 = sshll.u32 [#allocation8], 4
      %s52 = int_to_ptr.vmem [resolvable:$true] %s51
      %57 = dma.hbm_to_vmem [thread:$0]  %s3, 1024, %s52, [#allocation9], 64, 64, 4
    $region17: #{tpu_custom_call.1} parent=1 // pred_fallthru
      _
    // Predicated region
    $region18: #{tpu_custom_call.1} parent=1 // pred_check
      _
    $region19: #{tpu_custom_call.1} parent=1 // pred_check_branch
      %59 = sbr.rel (0) target = $region21
    $region20: #{tpu_custom_call.1} parent=1 // pred_region
      %s61 = ssub.s32 16, 16
      %62 = vsyncadd [#allocation9], %s61
      %s64 = sshll.u32 [#allocation10], 4
      %s65 = int_to_ptr.vmem [resolvable:$true] %s64
      %67 = dma.hbm_to_vmem [thread:$0]  %s4, 16, %s65, [#allocation9]
    $region21: #{tpu_custom_call.1} parent=1 // pred_fallthru
      _
    // Predicated region
    $region22: #{tpu_custom_call.1} parent=1 // pred_check
      _
    $region23: #{tpu_custom_call.1} parent=1 // pred_check_branch
      %69 = sbr.rel (0) target = $region25
    $region24: #{tpu_custom_call.1} parent=1 // pred_region
      %70 = dma.done [#allocation3], 256
    $region25: #{tpu_custom_call.1} parent=1 // pred_fallthru
      _
    // Predicated region
    $region26: #{tpu_custom_call.1} parent=1 // pred_check
      _
    $region27: #{tpu_custom_call.1} parent=1 // pred_check_branch
      %72 = sbr.rel (0) target = $region29
    $region28: #{tpu_custom_call.1} parent=1 // pred_region
      %73 = dma.done [#allocation6], 16
    $region29: #{tpu_custom_call.1} parent=1 // pred_fallthru
      _
    // Predicated region
    $region30: #{tpu_custom_call.1} parent=1 // pred_check
      _
    $region31: #{tpu_custom_call.1} parent=1 // pred_check_branch
      %75 = sbr.rel (0) target = $region33
    $region32: #{tpu_custom_call.1} parent=1 // pred_region
      %76 = dma.done [#allocation6], 16
    $region33: #{tpu_custom_call.1} parent=1 // pred_fallthru
      _
    // Predicated region
    $region34: #{tpu_custom_call.1} parent=1 // pred_check
      _
    $region35: #{tpu_custom_call.1} parent=1 // pred_check_branch
      %78 = sbr.rel (0) target = $region37
    $region36: #{tpu_custom_call.1} parent=1 // pred_region
      %79 = dma.done [#allocation9], 1024
    $region37: #{tpu_custom_call.1} parent=1 // pred_fallthru
      _
    // Predicated region
    $region38: #{tpu_custom_call.1} parent=1 // pred_check
      _
    $region39: #{tpu_custom_call.1} parent=1 // pred_check_branch
      %81 = sbr.rel (0) target = $region41
    $region40: #{tpu_custom_call.1} parent=1 // pred_region
      %82 = dma.done [#allocation9], 16
    $region41: #{tpu_custom_call.1} parent=1 // pred_fallthru
      _
    %v84 = vld [vmem:[#allocation2] sm:$0xff]
    %v85 = vld [vmem:[#allocation2 + $0x8] sm:$0xff]
    %86 = vadd.xlane.f32.xlu0 %v84
    %v87 = vpop.xlane.xlu0 %86
    %88 = vadd.xlane.f32.xlu0 %v85
    %v89 = vpop.xlane.xlu0 %88
    %v90 = vmul.f32 %v87, 0.03125
    %v91 = vmul.f32 %v89, 0.03125
    %v92 = vsub.f32 %v84, %v90
    %v93 = vsub.f32 %v85, %v91
    %v94 = vlaneseq
    %v95 = vand.u32 %v94, 127
    %vm96 = vcmp.lt.s32.totalorder %v95, 32
    %v97 = vsel %vm96, %v92, 0.0
    %v98 = vsel %vm96, %v93, 0.0
    %v99 = vmul.f32 %v97, %v97
    %v100 = vmul.f32 %v98, %v98
    %101 = vadd.xlane.f32.xlu0 %v99
    %v102 = vpop.xlane.xlu0 %101
    %103 = vadd.xlane.f32.xlu0 %v100
    %v104 = vpop.xlane.xlu0 %103
    %v105 = vmul.f32 %v102, 0.03125
    %v106 = vmul.f32 %v104, 0.03125
    %v107 = vadd.f32 %v105, 1e-05
    %v108 = vadd.f32 %v106, 1e-05
    %v109 = vrsqrt.pop %v107
    %v110 = vrsqrt.pop %v108
    %v111 = vmul.f32 %v97, %v109
    %v112 = vmul.f32 %v98, %v110
    %v113 = vld [vmem:[#allocation5] sm:$0x1]
    %v115 = vlaneseq
    %v116 = vshrl.u32 %v115, 7
    %v117 = vsub.s32 0, %v116
    %v118 = vrot.slane %v113, %v117
    %v120 = vmul.f32 %v111, %v118
    %v121 = vmul.f32 %v112, %v118
    %v122 = vld [vmem:[#allocation7] sm:$0x1]
    %v124 = vlaneseq
    %v125 = vshrl.u32 %v124, 7
    %v126 = vsub.s32 0, %v125
    %v127 = vrot.slane %v122, %v126
    %v129 = vadd.f32 %v120, %v127
    %v130 = vadd.f32 %v121, %v127
    %v131 = vpack.c.bf16 %v130, %v129
    %v132 = vld [vmem:[#allocation8] sm:$0xf]
    %v133 = vld [vmem:[#allocation8 + $0x4] sm:$0xf]
    %v134 = vld [vmem:[#allocation8 + $0x8] sm:$0xf]
    %v135 = vld [vmem:[#allocation8 + $0xc] sm:$0xf]
    %v136 = vld [vmem:[#allocation8 + $0x10] sm:$0xf]
    %v137 = vld [vmem:[#allocation8 + $0x14] sm:$0xf]
    %v138 = vld [vmem:[#allocation8 + $0x18] sm:$0xf]
    %v139 = vld [vmem:[#allocation8 + $0x1c] sm:$0xf]
    %v140 = vld [vmem:[#allocation8 + $0x20] sm:$0xf]
    %v141 = vld [vmem:[#allocation8 + $0x24] sm:$0xf]
    %v142 = vld [vmem:[#allocation8 + $0x28] sm:$0xf]
    %v143 = vld [vmem:[#allocation8 + $0x2c] sm:$0xf]
    %v144 = vld [vmem:[#allocation8 + $0x30] sm:$0xf]
    %v145 = vld [vmem:[#allocation8 + $0x34] sm:$0xf]
    %v146 = vld [vmem:[#allocation8 + $0x38] sm:$0xf]
    %v147 = vld [vmem:[#allocation8 + $0x3c] sm:$0xf]
    %v148 = vld [vmem:[#allocation10] sm:$0x1]
    %v150 = vlaneseq
    %v151 = vshrl.u32 %v150, 7
    %v152 = vsub.s32 0, %v151
    %v153 = vrot.slane %v148, %v152
    %v171 = vunpack.c.l.b16 %v132
    %v172 = vunpack.c.l.b16 %v133
    %v173 = vunpack.c.l.b16 %v134
    %v174 = vunpack.c.l.b16 %v135
    %v175 = vunpack.c.l.b16 %v136
    %v176 = vunpack.c.l.b16 %v137
    %v177 = vunpack.c.l.b16 %v138
    %v178 = vunpack.c.l.b16 %v139
    %v179 = vunpack.c.l.b16 %v140
    %v180 = vunpack.c.l.b16 %v141
    %v181 = vunpack.c.l.b16 %v142
    %v182 = vunpack.c.l.b16 %v143
    %v183 = vunpack.c.l.b16 %v144
    %v184 = vunpack.c.l.b16 %v145
    %v185 = vunpack.c.l.b16 %v146
    %v186 = vunpack.c.l.b16 %v147
    %v187 = vpack.c.b16 %v172, %v171
    %v188 = vpack.c.b16 %v174, %v173
    %v189 = vpack.c.b16 %v176, %v175
    %v190 = vpack.c.b16 %v178, %v177
    %v191 = vpack.c.b16 %v180, %v179
    %v192 = vpack.c.b16 %v182, %v181
    %v193 = vpack.c.b16 %v184, %v183
    %v194 = vpack.c.b16 %v186, %v185
    %203 = vmatprep.subr.bf16.mxu0 0
    %204 = vmatpush1.bf16.msra.mxu0 %v187
    %205 = vmatprep.subr.bf16.mxu0 0
    %206 = vmatpush1.bf16.msra.mxu0 %v188
    %207 = vmatprep.subr.bf16.mxu0 0
    %208 = vmatpush1.bf16.msra.mxu0 %v189
    %209 = vmatprep.subr.bf16.mxu0 0
    %210 = vmatpush1.bf16.msra.mxu0 %v190
    %211 = vmatprep.subr.bf16.mxu0 0
    %212 = vmatpush1.bf16.msra.mxu0 %v191
    %213 = vmatprep.subr.bf16.mxu0 0
    %214 = vmatpush1.bf16.msra.mxu0 %v192
    %215 = vmatprep.subr.bf16.mxu0 0
    %216 = vmatpush1.bf16.msra.mxu0 %v193
    %217 = vmatprep.subr.bf16.mxu0 0
    %218 = vmatpush1.bf16.msra.mxu0 %v194
    %219 = vmatprep.subr.bf16.mxu0 0
    %220 = vmatpush1.bf16.msra.mxu0 0
    %221 = vmatprep.subr.bf16.mxu0 0
    %222 = vmatpush1.bf16.msra.mxu0 0
    %223 = vmatprep.subr.bf16.mxu0 0
    %224 = vmatpush1.bf16.msra.mxu0 0
    %225 = vmatprep.subr.bf16.mxu0 0
    %226 = vmatpush1.bf16.msra.mxu0 0
    %227 = vmatprep.subr.bf16.mxu0 0
    %228 = vmatpush1.bf16.msra.mxu0 0
    %229 = vmatprep.subr.bf16.mxu0 0
    %230 = vmatpush1.bf16.msra.mxu0 0
    %231 = vmatprep.subr.bf16.mxu0 0
    %232 = vmatpush1.bf16.msra.mxu0 0
    %233 = vmatprep.subr.bf16.mxu0 0
    %234 = vmatpush1.bf16.msra.mxu0 0
    %235 = vmatprep.mubr.bf16.mxu0 0
    %236 = vmatmul.mubr.bf16.gmra.mrb[0].mxu0 %v131
    %v237 = vpop.f32.mrb[0].mxu0
    %v238 = vadd.f32 %v153, %v237
    %v239 = vpop.f32.mrb[0].mxu0
    %v240 = vpop.f32.mrb[0].mxu0
    %v241 = vadd.f32 %v153, %v240
    %v242 = vpop.f32.mrb[0].mxu0
    %243 = vdwg.mxu0
    %v244 = vsel %vm96, %v238, -1e+30
    %v245 = vsel %vm96, %v241, -1e+30
    %246 = vmax.xlane.f32.xlu0 %v244
    %v247 = vpop.xlane.xlu0 %246
    %248 = vmax.xlane.f32.xlu0 %v245
    %v249 = vpop.xlane.xlu0 %248
    %v250 = vsub.f32 %v244, %v247
    %v251 = vsub.f32 %v245, %v249
    %v252 = vmul.f32 %v250, 1.442695
    %v253 = vpow.pop %v252
    %v254 = vmul.f32 %v251, 1.442695
    %v255 = vpow.pop %v254
    %256 = vadd.xlane.f32.xlu0 %v253
    %v257 = vpop.xlane.xlu0 %256
    %258 = vadd.xlane.f32.xlu0 %v255
    %v259 = vpop.xlane.xlu0 %258
    %v260 = vrcp.pop %v257
    %v261 = vmul.f32 1.0, %v260
    %v262 = vrcp.pop %v259
    %v263 = vmul.f32 1.0, %v262
    %v264 = vmul.f32 %v253, %v261
    %v265 = vmul.f32 %v255, %v263
    %266 = vst [vmem:[#allocation11] sm:$0xff] %v264
    %267 = vst [vmem:[#allocation11 + $0x8] sm:$0xff] %v265
    // Predicated region
    $region42: #{tpu_custom_call.1} parent=1 // pred_check
      _
    $region43: #{tpu_custom_call.1} parent=1 // pred_check_branch
      %269 = sbr.rel (0) target = $region45
    $region44: #{tpu_custom_call.1} parent=1 // pred_region
      %s271 = ssub.s32 256, 256
      %272 = vsyncadd [#allocation4], %s271
      %s273 = sshll.u32 [#allocation11], 4
      %s274 = int_to_ptr.vmem [resolvable:$true] %s273
      %279 = dma.vmem_to_hbm [thread:$0]  %s274, 256, %s5, [#allocation4], 128, 128, 8
    $region45: #{tpu_custom_call.1} parent=1 // pred_fallthru
      _
    // Predicated region
    $region46: #{tpu_custom_call.1} parent=1 // pred_check
      _
    $region47: #{tpu_custom_call.1} parent=1 // pred_check_branch
      %281 = sbr.rel (0) target = $region49
    $region48: #{tpu_custom_call.1} parent=1 // pred_region
      %282 = dma.done [#allocation4], 256
    $region49: #{tpu_custom_call.1} parent=1 // pred_fallthru
      _
    %283 = vsyncpa [#allocation3], 1
    %284 = vsyncpa [#allocation6], 1
    %285 = vsyncpa [#allocation9], 1
    %286 = vsyncpa [#allocation4], 1

</llo_original>
